<compile_context>
chip_gen: v7x
topology: tpu7x:2x2x1
jax: 0.10.0
libtpu: 0.0.40
codegen_flags: <defaults>
</compile_context>

<pallas_src>
import functools

import jax
import jax.numpy as jnp
from jax.experimental import pallas as pl
from jax.experimental.pallas import tpu as pltpu

LANE = 128
_TARGET_LANES = 1024                    # preferred contiguous last-dim chunk
_STEP_VMEM_BUDGET = 24 * 1024 * 1024    # per-grid-step allocation budget
_VMEM_LIMIT = 48 * 1024 * 1024          # scoped VMEM limit (< v7x 64 MiB phys)
_UNROLL = 4


def _channel_attention_kernel(x_ref, w1t_ref, w2t_ref, o_ref,
                              sum_acc, max_acc, *,
                              hw_total, blk_hw, lw, mask_tail, n_chunks,
                              unroll):
    # x_ref  : (Bb, C, blk_hw) spatial chunk, native dtype
    # w1t_ref: (C, Cm)  fc1 weight, pre-transposed
    # w2t_ref: (Cm, C)  fc2 weight, pre-transposed
    # o_ref  : (Bb, C, 1)
    # sum_acc: (Bb, C, lw) f32 running partial sum (VPU only)
    # max_acc: (Bb, C, lw) native-dtype running partial max (exact, monotone)
    k = pl.program_id(1)

    @pl.when(k == 0)
    def _init():
        sum_acc[...] = jnp.zeros_like(sum_acc)
        max_acc[...] = jnp.full_like(max_acc, -jnp.inf)

    def accum_slab(start):
        if not isinstance(start, int):
            start = pl.multiple_of(start, lw)
        sl = x_ref[:, :, pl.ds(start, lw)]              # read slab from the ref
        sum_acc[...] += sl.astype(jnp.float32)
        max_acc[...] = jnp.maximum(max_acc[...], sl)    # native-dtype max

    def accum_range(n_slabs):
        # n_slabs is a static Python int
        if n_slabs <= 0:
            return
        if n_slabs <= unroll:
            for j in range(n_slabs):
                accum_slab(j * lw)
        else:
            def body(j, carry):
                accum_slab(j * lw)
                return carry
            jax.lax.fori_loop(0, n_slabs, body, 0, unroll=unroll)

    n_sub = blk_hw // lw

    if not mask_tail:
        accum_range(n_sub)
    else:
        # Only the last spatial chunk pays the lane mask; all earlier chunks
        # stream with plain add+max.
        tail_valid = hw_total - (n_chunks - 1) * blk_hw      # static, > 0
        tail_full = tail_valid // lw                          # full slabs
        tail_rem = tail_valid - tail_full * lw                # partial slab

        @pl.when(k < n_chunks - 1)
        def _stream():
            accum_range(n_sub)

        @pl.when(k == n_chunks - 1)
        def _tail():
            accum_range(tail_full)
            if tail_rem > 0:
                start = tail_full * lw
                sl = x_ref[:, :, pl.ds(start, lw)]
                lane = jax.lax.broadcasted_iota(jnp.int32, (1, 1, lw), 2)
                valid = lane < tail_rem
                sum_acc[...] += jnp.where(valid, sl.astype(jnp.float32), 0.0)
                neg = jnp.asarray(-jnp.inf, dtype=max_acc.dtype)
                max_acc[...] = jnp.maximum(max_acc[...],
                                           jnp.where(valid, sl, neg))

    @pl.when(k == n_chunks - 1)
    def _finalize():
        # Single cross-lane (XLU) reduce per image.
        avg = jnp.sum(sum_acc[...], axis=-1) * (1.0 / hw_total)      # (Bb, C)
        mx = jnp.max(max_acc[...], axis=-1).astype(jnp.float32)      # (Bb, C)
        # Shared MLP runs once on the stacked [avg; max] rows.  NOTE: rows never
        # mix (the matmul mixes channels, not rows), so padded batch rows from a
        # ragged last batch block stay garbage-in-garbage-out and the OOB output
        # rows are clipped on writeback — keep it that way.
        pooled = jnp.concatenate([avg, mx], axis=0)                  # (2Bb, C)
        pooled = pooled.astype(w1t_ref.dtype)
        h = jnp.maximum(
            jnp.dot(pooled, w1t_ref[...], preferred_element_type=jnp.float32),
            0.0)                                                     # (2Bb, Cm)
        o = jnp.dot(h.astype(w2t_ref.dtype), w2t_ref[...],
                    preferred_element_type=jnp.float32)              # (2Bb, C)
        bb = avg.shape[0]
        gate = jax.nn.sigmoid(o[:bb, :] + o[bb:, :])
        o_ref[...] = gate[:, :, None].astype(o_ref.dtype)


def _choose_tiling(B, C, HW, itemsize, max_batch_block, max_hw_block):
    # 1) spatial chunk first: long lane-contiguous last-dim segments are the
    #    biggest lever for this memory-bound kernel (>=512 lanes ~85% of HBM
    #    roofline vs ~29% at 128 lanes).
    blk_hw = HW if HW <= _TARGET_LANES else _TARGET_LANES
    if max_hw_block is not None:
        cap = max(LANE, (max_hw_block // LANE) * LANE)
        if cap < blk_hw:
            blk_hw = cap

    def step_bytes(bb, bhw):
        lw_ = LANE if bhw % LANE == 0 else bhw
        x_tile = bb * C * bhw * itemsize            # one input block
        accs = bb * C * lw_ * (4 + itemsize)        # f32 sum + native-dtype max
        return 2 * x_tile + accs                    # double-buffered input

    # 2) batch block: cap at ceil(B/2) so the "parallel" batch axis has >=2
    #    steps (both TensorCores on v7x get work); shrink Bb (down to 1) before
    #    touching blk_hw so DMA segments stay long.
    Bb = max(1, min(B, max_batch_block, -(-B // 2)))
    while Bb > 1 and step_bytes(Bb, blk_hw) > _STEP_VMEM_BUDGET:
        Bb -= 1
    while (blk_hw > LANE and blk_hw % LANE == 0
           and step_bytes(Bb, blk_hw) > _STEP_VMEM_BUDGET):
        blk_hw = max(LANE, (blk_hw // 2) // LANE * LANE)

    lw = LANE if blk_hw % LANE == 0 else blk_hw
    mask_tail = (HW % blk_hw) != 0
    # Tail-mask math assumes lane-width accumulators; if lw selection changes,
    # this must be revisited.
    assert (not mask_tail) or lw == LANE
    return Bb, blk_hw, lw, mask_tail


def channel_attention(x, w1, w2, *, max_batch_block=8, max_hw_block=None):
    """x: (B, C, H, W) NCHW; w1: (C//r, C); w2: (C, C//r).
    Returns sigmoid(fc2(relu(fc1(avgpool(x)))) + fc2(relu(fc1(maxpool(x)))))
    with shape (B, C, 1, 1), matching the PyTorch ChannelAttention forward."""
    B, C, H, W = x.shape
    Cm = w1.shape[0]
    assert w1.shape == (Cm, C) and w2.shape == (C, Cm)
    HW = H * W
    x2 = x.reshape(B, C, HW)
    itemsize = jnp.dtype(x.dtype).itemsize

    Bb, blk_hw, lw, mask_tail = _choose_tiling(
        B, C, HW, itemsize, max_batch_block, max_hw_block)
    n_chunks = pl.cdiv(HW, blk_hw)
    grid = (pl.cdiv(B, Bb), n_chunks)

    # Weights: transpose + cast once, outside the kernel body.  Keep them bf16
    # when activations are bf16 (halves their HBM/VMEM footprint); the dots
    # still accumulate in f32 via preferred_element_type.
    w_dtype = jnp.bfloat16 if x.dtype == jnp.bfloat16 else jnp.float32
    w1t = jnp.asarray(w1, w_dtype).T              # (C, Cm)
    w2t = jnp.asarray(w2, w_dtype).T              # (Cm, C)

    kernel = functools.partial(
        _channel_attention_kernel,
        hw_total=HW, blk_hw=blk_hw, lw=lw, mask_tail=mask_tail,
        n_chunks=n_chunks, unroll=_UNROLL)

    cost = pl.CostEstimate(
        flops=2 * B * C * HW + 8 * B * C * Cm,
        transcendentals=B * C,
        bytes_accessed=(B * C * HW * itemsize + B * C * itemsize
                        + 2 * C * Cm * jnp.dtype(w_dtype).itemsize),
    )

    # TODO(synk): for very small blk_hw (<=256 lanes) a deeper pipeline
    # (pipeline_mode=pl.Buffered(3)) would hide DMA issue latency; default
    # double-buffering is used here.
    out = pl.pallas_call(
        kernel,
        out_shape=jax.ShapeDtypeStruct((B, C, 1), x.dtype),
        grid_spec=pltpu.PrefetchScalarGridSpec(
            num_scalar_prefetch=0,
            grid=grid,
            in_specs=[
                pl.BlockSpec((Bb, C, blk_hw), lambda b, k: (b, 0, k)),
                pl.BlockSpec((C, Cm), lambda b, k: (0, 0)),
                pl.BlockSpec((Cm, C), lambda b, k: (0, 0)),
            ],
            out_specs=pl.BlockSpec((Bb, C, 1), lambda b, k: (b, 0, 0)),
            scratch_shapes=[
                pltpu.VMEM((Bb, C, lw), jnp.float32),   # running sum (f32)
                pltpu.VMEM((Bb, C, lw), x.dtype),       # running max (native)
            ],
        ),
        compiler_params=pltpu.CompilerParams(
            dimension_semantics=("parallel", "arbitrary"),
            vmem_limit_bytes=_VMEM_LIMIT,
        ),
        cost_estimate=cost,
    )(x2, w1t, w2t)

    return out.reshape(B, C, 1, 1)


def make_params(in_planes, ratio, key):
    """Synthetic weights with the shapes Conv2d(..., 1, bias=False) would have
    (1x1 kernels squeezed to 2-D matrices)."""
    mid = max(1, in_planes // ratio)
    k1, k2 = jax.random.split(key)
    w1 = jax.random.normal(k1, (mid, in_planes), jnp.float32) / jnp.sqrt(in_planes)
    w2 = jax.random.normal(k2, (in_planes, mid), jnp.float32) / jnp.sqrt(mid)
    return w1, w2


def channel_attention_ref(x, w1, w2):
    """Pure-JAX reference identical to the PyTorch forward."""
    xf = x.astype(jnp.float32)
    avg = jnp.mean(xf, axis=(2, 3))                    # (B, C)
    mx = jnp.max(xf, axis=(2, 3))                      # (B, C)

    def mlp(p):
        return jnp.maximum(p @ w1.T, 0.0) @ w2.T

    return jax.nn.sigmoid(mlp(avg) + mlp(mx))[:, :, None, None]


if __name__ == "__main__":
    key = jax.random.PRNGKey(0)
    kx, kp, kx2, kp2, kx3 = jax.random.split(key, 5)

    # --- test 1: nominal small config (in_planes=32, ratio=16 -> hidden=2) ---
    B, C, H, W = 2, 32, 16, 16
    x = jax.random.normal(kx, (B, C, H, W), jnp.float32)
    w1, w2 = make_params(C, 16, kp)
    y = jax.block_until_ready(channel_attention(x, w1, w2))
    y_ref = channel_attention_ref(x, w1, w2)
    assert y.shape == (B, C, 1, 1)
    assert jnp.allclose(y, y_ref, atol=1e-5, rtol=1e-5), "f32 mismatch"

    # --- test 2: multi-chunk spatial grid + masked tail + ragged batch block --
    B2, C2, H2, W2 = 3, 64, 18, 18                 # HW = 324, not a 128 multiple
    x2 = jax.random.normal(kx2, (B2, C2, H2, W2), jnp.float32)
    w1b, w2b = make_params(C2, 16, kp2)
    y2 = jax.block_until_ready(
        channel_attention(x2, w1b, w2b, max_hw_block=128))   # -> blk_hw = 128
    y2_ref = channel_attention_ref(x2, w1b, w2b)
    assert jnp.allclose(y2, y2_ref, atol=1e-5, rtol=1e-5), "chunked mismatch"

    # --- test 3: bf16 activations stay bf16 through DMA; bf16 max accumulator -
    xb = x.astype(jnp.bfloat16)
    yb = jax.block_until_ready(channel_attention(xb, w1, w2))
    yb_ref = channel_attention_ref(xb, w1, w2)
    assert yb.dtype == jnp.bfloat16
    assert jnp.allclose(yb.astype(jnp.float32), yb_ref.astype(jnp.float32),
                        atol=3e-2, rtol=3e-2), "bf16 mismatch"

    # --- test 4: large spatial -> fori_loop slab path + masked tail chunk -----
    B3, C3, H3, W3 = 2, 32, 40, 40                 # HW = 1600 -> blk_hw = 1024
    x3 = jax.random.normal(kx3, (B3, C3, H3, W3), jnp.float32)
    y3 = jax.block_until_ready(channel_attention(x3, w1, w2))
    y3_ref = channel_attention_ref(x3, w1, w2)
    assert jnp.allclose(y3, y3_ref, atol=1e-5, rtol=1e-5), "fori_loop mismatch"

    print("KERNEL_OK")
</pallas_src>

<mosaic_0001>
module attributes {stable_mosaic.version = 11 : i64} {
  func.func @_channel_attention_kernel(%arg0: i32, %arg1: i32, %arg2: memref<1x32x256xf32, #tpu.memory_space<vmem>>, %arg3: memref<32x2xf32, #tpu.memory_space<vmem>>, %arg4: memref<2x32xf32, #tpu.memory_space<vmem>>, %arg5: memref<1x32x1xf32, #tpu.memory_space<vmem>>, %arg6: memref<1x32x128xf32, #tpu.memory_space<vmem>>, %arg7: memref<1x32x128xf32, #tpu.memory_space<vmem>>) attributes {dimension_semantics = [#tpu.dimension_semantics<parallel>, #tpu.dimension_semantics<arbitrary>], iteration_bounds = array<i64: 2, 1>, scalar_prefetch = 0 : i64, scratch_operands = 2 : i64, tpu.core_type = #tpu.core_type<tc>, window_params = [{transform_indices = @transform_0, window_bounds = array<i64: 1, 32, 256>}, {pipeline_mode = #tpu.pipeline_mode<synchronous>, transform_indices = @transform_1, window_bounds = array<i64: 32, 2>}, {pipeline_mode = #tpu.pipeline_mode<synchronous>, transform_indices = @transform_2, window_bounds = array<i64: 2, 32>}, {transform_indices = @transform_3, window_bounds = array<i64: 1, 32, 1>}]} {
    %c0_i32 = arith.constant 0 : i32
    %0 = arith.cmpi eq, %arg1, %c0_i32 : i32
    %1 = arith.extui %0 : i1 to i32
    %c0_i32_0 = arith.constant 0 : i32
    %2 = arith.cmpi ne, %1, %c0_i32_0 : i32
    scf.if %2 {
      %cst = arith.constant 0.000000e+00 : f32
      %20 = vector.broadcast %cst : f32 to vector<1x32x128xf32>
      %c0_31 = arith.constant 0 : index
      %c0_32 = arith.constant 0 : index
      %c0_33 = arith.constant 0 : index
      %21 = vector.load %arg6[%c0_31, %c0_32, %c0_33] : memref<1x32x128xf32, #tpu.memory_space<vmem>>, vector<1x32x128xf32>
      tpu.vector_store %arg6[%c0_31, %c0_32, %c0_33], %20 {strides = array<i32>} : memref<1x32x128xf32, #tpu.memory_space<vmem>>, vector<1x32x128xf32>,
      %cst_34 = arith.constant 0xFF800000 : f32
      %22 = vector.broadcast %cst_34 : f32 to vector<1x32x128xf32>
      %c0_35 = arith.constant 0 : index
      %c0_36 = arith.constant 0 : index
      %c0_37 = arith.constant 0 : index
      %23 = vector.load %arg7[%c0_35, %c0_36, %c0_37] : memref<1x32x128xf32, #tpu.memory_space<vmem>>, vector<1x32x128xf32>
      tpu.vector_store %arg7[%c0_35, %c0_36, %c0_37], %22 {strides = array<i32>} : memref<1x32x128xf32, #tpu.memory_space<vmem>>, vector<1x32x128xf32>,
    } else {
    }
    %c0 = arith.constant 0 : index
    %c0_1 = arith.constant 0 : index
    %c0_2 = arith.constant 0 : index
    %3 = vector.load %arg2[%c0, %c0_1, %c0_2] : memref<1x32x256xf32, #tpu.memory_space<vmem>>, vector<1x32x128xf32>
    %c0_3 = arith.constant 0 : index
    %c0_4 = arith.constant 0 : index
    %c0_5 = arith.constant 0 : index
    %4 = vector.load %arg6[%c0_3, %c0_4, %c0_5] : memref<1x32x128xf32, #tpu.memory_space<vmem>>, vector<1x32x128xf32>
    %5 = arith.addf %4, %3 : vector<1x32x128xf32>
    %c0_6 = arith.constant 0 : index
    %c0_7 = arith.constant 0 : index
    %c0_8 = arith.constant 0 : index
    %6 = vector.load %arg6[%c0_6, %c0_7, %c0_8] : memref<1x32x128xf32, #tpu.memory_space<vmem>>, vector<1x32x128xf32>
    tpu.vector_store %arg6[%c0_6, %c0_7, %c0_8], %5 {strides = array<i32>} : memref<1x32x128xf32, #tpu.memory_space<vmem>>, vector<1x32x128xf32>,
    %c0_9 = arith.constant 0 : index
    %c0_10 = arith.constant 0 : index
    %c0_11 = arith.constant 0 : index
    %7 = vector.load %arg7[%c0_9, %c0_10, %c0_11] : memref<1x32x128xf32, #tpu.memory_space<vmem>>, vector<1x32x128xf32>
    %8 = arith.maximumf %7, %3 : vector<1x32x128xf32>
    %c0_12 = arith.constant 0 : index
    %c0_13 = arith.constant 0 : index
    %c0_14 = arith.constant 0 : index
    %9 = vector.load %arg7[%c0_12, %c0_13, %c0_14] : memref<1x32x128xf32, #tpu.memory_space<vmem>>, vector<1x32x128xf32>
    tpu.vector_store %arg7[%c0_12, %c0_13, %c0_14], %8 {strides = array<i32>} : memref<1x32x128xf32, #tpu.memory_space<vmem>>, vector<1x32x128xf32>,
    %c0_15 = arith.constant 0 : index
    %c0_16 = arith.constant 0 : index
    %c128 = arith.constant 128 : index
    %10 = vector.load %arg2[%c0_15, %c0_16, %c128] : memref<1x32x256xf32, #tpu.memory_space<vmem>>, vector<1x32x128xf32>
    %c0_17 = arith.constant 0 : index
    %c0_18 = arith.constant 0 : index
    %c0_19 = arith.constant 0 : index
    %11 = vector.load %arg6[%c0_17, %c0_18, %c0_19] : memref<1x32x128xf32, #tpu.memory_space<vmem>>, vector<1x32x128xf32>
    %12 = arith.addf %11, %10 : vector<1x32x128xf32>
    %c0_20 = arith.constant 0 : index
    %c0_21 = arith.constant 0 : index
    %c0_22 = arith.constant 0 : index
    %13 = vector.load %arg6[%c0_20, %c0_21, %c0_22] : memref<1x32x128xf32, #tpu.memory_space<vmem>>, vector<1x32x128xf32>
    tpu.vector_store %arg6[%c0_20, %c0_21, %c0_22], %12 {strides = array<i32>} : memref<1x32x128xf32, #tpu.memory_space<vmem>>, vector<1x32x128xf32>,
    %c0_23 = arith.constant 0 : index
    %c0_24 = arith.constant 0 : index
    %c0_25 = arith.constant 0 : index
    %14 = vector.load %arg7[%c0_23, %c0_24, %c0_25] : memref<1x32x128xf32, #tpu.memory_space<vmem>>, vector<1x32x128xf32>
    %15 = arith.maximumf %14, %10 : vector<1x32x128xf32>
    %c0_26 = arith.constant 0 : index
    %c0_27 = arith.constant 0 : index
    %c0_28 = arith.constant 0 : index
    %16 = vector.load %arg7[%c0_26, %c0_27, %c0_28] : memref<1x32x128xf32, #tpu.memory_space<vmem>>, vector<1x32x128xf32>
    tpu.vector_store %arg7[%c0_26, %c0_27, %c0_28], %15 {strides = array<i32>} : memref<1x32x128xf32, #tpu.memory_space<vmem>>, vector<1x32x128xf32>,
    %c0_i32_29 = arith.constant 0 : i32
    %17 = arith.cmpi eq, %arg1, %c0_i32_29 : i32
    %18 = arith.extui %17 : i1 to i32
    %c0_i32_30 = arith.constant 0 : i32
    %19 = arith.cmpi ne, %18, %c0_i32_30 : i32
    scf.if %19 {
      %c0_31 = arith.constant 0 : index
      %c0_32 = arith.constant 0 : index
      %c0_33 = arith.constant 0 : index
      %20 = vector.load %arg6[%c0_31, %c0_32, %c0_33] : memref<1x32x128xf32, #tpu.memory_space<vmem>>, vector<1x32x128xf32>
      %cst = arith.constant dense<0.000000e+00> : vector<1x32xf32>
      %21 = vector.multi_reduction <add>, %20, %cst [2] : vector<1x32x128xf32> to vector<1x32xf32>
      %cst_34 = arith.constant 3.906250e-03 : f32
      %22 = vector.broadcast %cst_34 : f32 to vector<1x32xf32>
      %23 = arith.mulf %21, %22 : vector<1x32xf32>
      %c0_35 = arith.constant 0 : index
      %c0_36 = arith.constant 0 : index
      %c0_37 = arith.constant 0 : index
      %24 = vector.load %arg7[%c0_35, %c0_36, %c0_37] : memref<1x32x128xf32, #tpu.memory_space<vmem>>, vector<1x32x128xf32>
      %cst_38 = arith.constant dense<0xFF800000> : vector<1x32xf32>
      %25 = vector.multi_reduction <maximumf>, %24, %cst_38 [2] : vector<1x32x128xf32> to vector<1x32xf32>
      %26 = tpu.concatenate %23, %25 in 0 : vector<1x32xf32>, vector<1x32xf32> -> vector<2x32xf32>
      %c0_39 = arith.constant 0 : index
      %c0_40 = arith.constant 0 : index
      %27 = vector.load %arg3[%c0_39, %c0_40] : memref<32x2xf32, #tpu.memory_space<vmem>>, vector<32x2xf32>
      %cst_41 = arith.constant dense<0.000000e+00> : vector<2x2xf32>
      %28 = tpu.matmul %26, %27, %cst_41 {dimension_numbers = #tpu.dot_dimension_numbers<[1], [0], [0], [1], [0, 0, 1, 1], [], []>} : vector<2x32xf32>, vector<32x2xf32>, vector<2x2xf32> -> vector<2x2xf32>
      %cst_42 = arith.constant 0.000000e+00 : f32
      %29 = vector.broadcast %cst_42 : f32 to vector<2x2xf32>
      %30 = arith.maximumf %28, %29 : vector<2x2xf32>
      %c0_43 = arith.constant 0 : index
      %c0_44 = arith.constant 0 : index
      %31 = vector.load %arg4[%c0_43, %c0_44] : memref<2x32xf32, #tpu.memory_space<vmem>>, vector<2x32xf32>
      %cst_45 = arith.constant dense<0.000000e+00> : vector<2x32xf32>
      %32 = tpu.matmul %30, %31, %cst_45 {dimension_numbers = #tpu.dot_dimension_numbers<[1], [0], [0], [1], [0, 0, 1, 1], [], []>} : vector<2x2xf32>, vector<2x32xf32>, vector<2x32xf32> -> vector<2x32xf32>
      %33 = vector.extract_strided_slice %32 {offsets = [0, 0], sizes = [1, 32], strides = [1, 1]} : vector<2x32xf32> to vector<1x32xf32>
      %34 = vector.extract_strided_slice %32 {offsets = [1, 0], sizes = [1, 32], strides = [1, 1]} : vector<2x32xf32> to vector<1x32xf32>
      %35 = arith.addf %33, %34 : vector<1x32xf32>
      %36 = arith.negf %35 : vector<1x32xf32>
      %37 = math.exp %36 : vector<1x32xf32>
      %cst_46 = arith.constant 1.000000e+00 : f32
      %38 = vector.broadcast %cst_46 : f32 to vector<1x32xf32>
      %39 = arith.addf %38, %37 : vector<1x32xf32>
      %40 = arith.divf %38, %39 : vector<1x32xf32>
      %41 = vector.shape_cast %40 : vector<1x32xf32> to vector<1x32x1xf32>
      %c0_47 = arith.constant 0 : index
      %c0_48 = arith.constant 0 : index
      %c0_49 = arith.constant 0 : index
      %42 = vector.load %arg5[%c0_47, %c0_48, %c0_49] : memref<1x32x1xf32, #tpu.memory_space<vmem>>, vector<1x32x1xf32>
      tpu.vector_store %arg5[%c0_47, %c0_48, %c0_49], %41 {strides = array<i32>} : memref<1x32x1xf32, #tpu.memory_space<vmem>>, vector<1x32x1xf32>,
    } else {
    }
    return
  }
  func.func @transform_0(%arg0: i32, %arg1: i32) -> (i32, i32, i32) {
    %c0_i32 = arith.constant 0 : i32
    %c0_i32_0 = arith.constant 0 : i32
    return %arg0, %c0_i32, %arg1 : i32, i32, i32
  }
  func.func @transform_1(%arg0: i32, %arg1: i32) -> (i32, i32) {
    %c0_i32 = arith.constant 0 : i32
    %c0_i32_0 = arith.constant 0 : i32
    %c0_i32_1 = arith.constant 0 : i32
    return %c0_i32, %c0_i32_0 : i32, i32
  }
  func.func @transform_2(%arg0: i32, %arg1: i32) -> (i32, i32) {
    %c0_i32 = arith.constant 0 : i32
    %c0_i32_0 = arith.constant 0 : i32
    %c0_i32_1 = arith.constant 0 : i32
    return %c0_i32, %c0_i32_0 : i32, i32
  }
  func.func @transform_3(%arg0: i32, %arg1: i32) -> (i32, i32, i32) {
    %c0_i32 = arith.constant 0 : i32
    %c0_i32_0 = arith.constant 0 : i32
    %c0_i32_1 = arith.constant 0 : i32
    return %arg0, %c0_i32, %c0_i32_0 : i32, i32, i32
  }
}

</mosaic_0001>

<llo_original>
// kernel: tpu_custom_call.1
$region0: #{tpu_custom_call.1}
  #allocation0 [shape = 'u32[]', space=smem, size = 0x4, offset = 0x4, fixed_abs, tag = 'smem constant byte address 0x4 - core index']
  #allocation1 [shape = 'u32[144,128]{1,0:T(1,128)}', space=vmem, size = 0x12000, scoped, tag = 'internal scratch']
  #allocation2 [shape = 'f32[1,32,128]{2,1,0:T(8,128)}', space=vmem, size = 0x4000, scoped, tag = 'scratch operand']
  #allocation3 [shape = 'f32[1,32,128]{2,1,0:T(8,128)}', space=vmem, size = 0x4000, scoped, tag = 'scratch operand']
  %s0 = inlined_call_operand.hbm [shape: f32[2,32,256], index: 0, kind: input, shape index: {}]
  %s1 = inlined_call_operand.vmem [shape: f32[32,2], index: 1, kind: input, shape index: {}]
  %s2 = inlined_call_operand.vmem [shape: f32[2,32], index: 2, kind: input, shape index: {}]
  %s3 = inlined_call_operand.vmem [shape: f32[2,32,1], index: 3, kind: output, shape index: {}]
  %s4 = sld [smem:[#allocation0]]
  $region57: #{tpu_custom_call.1} parent=0
    _
  %s6 = ssub.s32 1, %s4
  %s7 = scalar_select 0, %s6, %s4
  $region1: #{tpu_custom_call.1} parent=0
    #allocation4 [shape = 'u8[65536]{0}', space=vmem, size = 0x10000, scoped, tag = 'input window, operand 0']
    #allocation5 [shape = 's32[2]{0}', space=sflag, size = 0x8, scoped, tag = 'scoped memory for tpu_custom_call.1']
    %8 = vsyncpa [#allocation5], 0
    %s9 = scalar_lea.sflag [#allocation5], 1
    %10 = vsyncpa %s9, 0
    loop: start=0, step=1, limit=4
    $region2: #{tpu_custom_call.1} parent=1 // loop_pre_header
      _
    $region3: #{tpu_custom_call.1} parent=1 // loop_header
      %s12 = sphi 0, %s16
      %p13 = scmp.ge.s32.totalorder %s12, 4
      %s19 = sphi 0, %s31
      %s20 = sphi 0, %s27
      %s21 = sphi 0, %s19
      %s22 = sphi 0, %s20
      %s23 = sphi 0, %s21
      %s24 = sphi 0, %s22
      %s36 = sphi 0, %s38
      %s39 = sphi 0, %s36
      %s40 = sphi 0, %s39
      %s56 = sphi 0, %s40
      %s60 = sphi 0, %s60
      %s62 = sphi 0, %s60
      %s63 = sphi 0, %s62
      %s77 = sphi 0, %s63
      %s81 = sphi 0, %s81
      %s83 = sphi 0, %s81
      %s84 = sphi 0, %s83
      %s98 = sphi 0, %s84
      %s104 = sphi 0, %s106
      %s107 = sphi 0, %s104
      %s108 = sphi 0, %s107
      %s124 = sphi 0, %s108
    $region4: #{tpu_custom_call.1} parent=1 // loop_header_branch
      %15 = sbr.rel (%p13) target = $region8
    $region5: #{tpu_custom_call.1} parent=1 // loop_body
      %s17 = ssub.s32 %s12, 1
      %s18 = ssub.s32 %s12, 2
      %s25 = sadd.s32 1, %s20
      %p26 = scmp.ge.s32.totalorder %s25, 1
      %s27 = scalar_select %p26, 0, %s25
      %s28 = sadd.s32 1, %s19
      %s29 = scalar_select %p26, %s28, %s19
      %p30 = scmp.ge.s32.totalorder %s29, 2
      %s31 = scalar_select %p30, 0, %s29
      %s32 = ssub.s32 %s19, %s31
      %s33 = ssub.s32 %s20, %s27
      %s34 = sor.u32 %s32, %s33
      %p35 = scmp.eq.s32.totalorder %s34, 0
      %s37 = sadd.s32 %s36, 1
      %s38 = scalar_select %p35, %s36, %s37
      %p41 = pneg %p35
      %p42 = scmp.eq.s32.totalorder %s12, 1
      %p43 = por %p41, %p42
      %p44 = scmp.ne.s32.totalorder %s36, %s39
      %p45 = scmp.eq.s32.totalorder %s12, 0
      %p46 = por %p44, %p45
      %p47 = scmp.ne.s32.totalorder %s36, %s39
      %p48 = scmp.eq.s32.totalorder %s17, 1
      %p49 = por %p47, %p48
      %p50 = scmp.ne.s32.totalorder %s39, %s40
      %p51 = scmp.eq.s32.totalorder %s17, 0
      %p52 = por %p50, %p51
      %p53 = scmp.ne.s32.totalorder %s39, %s40
      %p54 = scmp.eq.s32.totalorder %s18, 1
      %p55 = por %p53, %p54
      %p57 = scmp.ne.s32.totalorder %s40, %s56
      %p58 = scmp.eq.s32.totalorder %s18, 0
      %p59 = por %p57, %p58
      %s61 = sadd.s32 %s60, 1
      %p64 = scmp.eq.s32.totalorder %s12, 1
      %p65 = scmp.ne.s32.totalorder %s60, %s62
      %p66 = scmp.eq.s32.totalorder %s12, 0
      %p67 = por %p65, %p66
      %p68 = scmp.ne.s32.totalorder %s60, %s62
      %p69 = scmp.eq.s32.totalorder %s17, 1
      %p70 = por %p68, %p69
      %p71 = scmp.ne.s32.totalorder %s62, %s63
      %p72 = scmp.eq.s32.totalorder %s17, 0
      %p73 = por %p71, %p72
      %p74 = scmp.ne.s32.totalorder %s62, %s63
      %p75 = scmp.eq.s32.totalorder %s18, 1
      %p76 = por %p74, %p75
      %p78 = scmp.ne.s32.totalorder %s63, %s77
      %p79 = scmp.eq.s32.totalorder %s18, 0
      %p80 = por %p78, %p79
      %s82 = sadd.s32 %s81, 1
      %p85 = scmp.eq.s32.totalorder %s12, 1
      %p86 = scmp.ne.s32.totalorder %s81, %s83
      %p87 = scmp.eq.s32.totalorder %s12, 0
      %p88 = por %p86, %p87
      %p89 = scmp.ne.s32.totalorder %s81, %s83
      %p90 = scmp.eq.s32.totalorder %s17, 1
      %p91 = por %p89, %p90
      %p92 = scmp.ne.s32.totalorder %s83, %s84
      %p93 = scmp.eq.s32.totalorder %s17, 0
      %p94 = por %p92, %p93
      %p95 = scmp.ne.s32.totalorder %s83, %s84
      %p96 = scmp.eq.s32.totalorder %s18, 1
      %p97 = por %p95, %p96
      %p99 = scmp.ne.s32.totalorder %s84, %s98
      %p100 = scmp.eq.s32.totalorder %s18, 0
      %p101 = por %p99, %p100
      %s102 = ssub.s32 %s19, %s31
      %p103 = scmp.eq.s32.totalorder %s102, 0
      %s105 = sadd.s32 %s104, 1
      %s106 = scalar_select %p103, %s104, %s105
      %p109 = pneg %p103
      %p110 = scmp.eq.s32.totalorder %s12, 1
      %p111 = por %p109, %p110
      %p112 = scmp.ne.s32.totalorder %s104, %s107
      %p113 = scmp.eq.s32.totalorder %s12, 0
      %p114 = por %p112, %p113
      %p115 = scmp.ne.s32.totalorder %s104, %s107
      %p116 = scmp.eq.s32.totalorder %s17, 1
      %p117 = por %p115, %p116
      %p118 = scmp.ne.s32.totalorder %s107, %s108
      %p119 = scmp.eq.s32.totalorder %s17, 0
      %p120 = por %p118, %p119
      %p121 = scmp.ne.s32.totalorder %s107, %s108
      %p122 = scmp.eq.s32.totalorder %s18, 1
      %p123 = por %p121, %p122
      %p125 = scmp.ne.s32.totalorder %s108, %s124
      %p126 = scmp.eq.s32.totalorder %s18, 0
      %p127 = por %p125, %p126
      %p128 = scmp.le.s32.totalorder 1, %s12
      %p129 = scmp.lt.s32.totalorder %s12, 3
      %p130 = pnand %p128, %p129
      %p131 = pneg %p130
      // Predicated region
      $region9: #{tpu_custom_call.1} parent=5 // pred_check
        _
      $region10: #{tpu_custom_call.1} parent=5 // pred_check_branch
        %133 = sbr.rel (%p130) target = $region12
      $region11: #{tpu_custom_call.1} parent=5 // pred_region
        %s134 = ssub.s32 %s12, 1
        // Predicated region
        $region13: #{tpu_custom_call.1} parent=11 // pred_check
          %p135 = pneg %p73
        $region14: #{tpu_custom_call.1} parent=11 // pred_check_branch
          %137 = sbr.rel (%p135) target = $region16
        $region15: #{tpu_custom_call.1} parent=11 // pred_region
          _
        $region16: #{tpu_custom_call.1} parent=11 // pred_fallthru
          _
        // Predicated region
        $region17: #{tpu_custom_call.1} parent=11 // pred_check
          %p138 = pneg %p94
        $region18: #{tpu_custom_call.1} parent=11 // pred_check_branch
          %140 = sbr.rel (%p138) target = $region20
        $region19: #{tpu_custom_call.1} parent=11 // pred_region
          _
        $region20: #{tpu_custom_call.1} parent=11 // pred_fallthru
          _
      $region12: #{tpu_custom_call.1} parent=5 // pred_fallthru
        _
      %p141 = scmp.lt.s32.totalorder %s12, 2
      // Predicated region
      $region21: #{tpu_custom_call.1} parent=5 // pred_check
        %p142 = pneg %p141
      $region22: #{tpu_custom_call.1} parent=5 // pred_check_branch
        %144 = sbr.rel (%p142) target = $region24
      $region23: #{tpu_custom_call.1} parent=5 // pred_region
        // Predicated region
        $region25: #{tpu_custom_call.1} parent=23 // pred_check
          %p145 = pneg %p46
        $region26: #{tpu_custom_call.1} parent=23 // pred_check_branch
          %147 = sbr.rel (%p145) target = $region28
        $region27: #{tpu_custom_call.1} parent=23 // pred_region
          %s148 = sand.u32 %s36, 1
          %s149 = scalar_lea.sflag [#allocation5], %s148
          %s150 = sand.u32 %s36, 1
          %s151 = smul.addr %s150, 64
          %s152 = scalar_lea.vmem [#allocation4], %s151
          %s153 = smul.u32 2, %s20
          %s155 = ssub.s32 1024, 1024
          %156 = vsyncadd %s149, %s155
          %s157 = smul.addr %s19, 8
          %s158 = sadd.s32 %s153, %s157
          %s159 = smul.addr %s158, 128
          %s160 = scalar_lea.hbm %s0, %s159
          %s161 = sshll.u32 %s152, 4
          %s162 = int_to_ptr.vmem [resolvable:$true] %s161
          %167 = dma.hbm_to_vmem [thread:$0]  %s160, 1024, %s162, %s149, 256, 256, 16
        $region28: #{tpu_custom_call.1} parent=23 // pred_fallthru
          _
      $region24: #{tpu_custom_call.1} parent=5 // pred_fallthru
        _
      %p168 = scmp.le.s32.totalorder 1, %s12
      %p169 = scmp.lt.s32.totalorder %s12, 3
      %p170 = pnand %p168, %p169
      %p171 = pneg %p170
      // Predicated region
      $region29: #{tpu_custom_call.1} parent=5 // pred_check
        _
      $region30: #{tpu_custom_call.1} parent=5 // pred_check_branch
        %173 = sbr.rel (%p170) target = $region32
      $region31: #{tpu_custom_call.1} parent=5 // pred_region
        %s174 = ssub.s32 %s12, 1
        %s175 = sand.u32 %s39, 1
        %s176 = scalar_lea.sflag [#allocation5], %s175
        %s177 = sand.u32 %s39, 1
        %s178 = smul.addr %s177, 64
        %s179 = scalar_lea.vmem [#allocation4], %s178
        // Predicated region
        $region33: #{tpu_custom_call.1} parent=31 // pred_check
          %p180 = pneg %p52
        $region34: #{tpu_custom_call.1} parent=31 // pred_check_branch
          %182 = sbr.rel (%p180) target = $region36
        $region35: #{tpu_custom_call.1} parent=31 // pred_region
          %183 = dma.done %s176, 1024
        $region36: #{tpu_custom_call.1} parent=31 // pred_fallthru
          _
        %s184 = sand.u32 %s39, 1
        %s185 = scalar_lea.sflag [#allocation5], %s184
        %s186 = sand.u32 %s39, 1
        %s187 = smul.addr %s186, 64
        %s188 = scalar_lea.vmem [#allocation4], %s187
        %p189 = pneg %p52
        %p190 = pneg %p49
        %p191 = pneg %p73
        %p192 = pneg %p70
        %p193 = pneg %p94
        %p194 = pneg %p91
        %p195 = pneg %p120
        %p196 = pneg %p117
        %p197 = scmp.lt.s32.totalorder %s21, 1
        %s198 = scalar_select %p197, %s21, 1
        %s199 = smul.addr %s198, 4
        %s200 = smul.addr %s199, 8
        %s201 = scalar_lea.vmem %s3, %s200
        %s202 = smul.u32 2, %s22
        %p203 = scmp.lt.s32.totalorder %s21, 1
        %s204 = scalar_select %p203, %s21, 1
        %s205 = smul.addr %s204, 4
        %s206 = smul.addr %s205, 8
        %s207 = scalar_lea.vmem %s3, %s206
        %p208 = scmp.eq.s32.totalorder %s22, 0
        // Predicated region
        $region37: #{tpu_custom_call.1} parent=31 // pred_check
          %p209 = pneg %p208
        $region38: #{tpu_custom_call.1} parent=31 // pred_check_branch
          %211 = sbr.rel (%p209) target = $region40
        $region39: #{tpu_custom_call.1} parent=31 // pred_region
          %212 = vst [vmem:[#allocation2] sm:$0xff] 0.0
          %213 = vst [vmem:[#allocation2 + $0x8] sm:$0xff] 0.0
          %214 = vst [vmem:[#allocation2 + $0x10] sm:$0xff] 0.0
          %215 = vst [vmem:[#allocation2 + $0x18] sm:$0xff] 0.0
          %216 = vst [vmem:[#allocation3] sm:$0xff] -inf
          %217 = vst [vmem:[#allocation3 + $0x8] sm:$0xff] -inf
          %218 = vst [vmem:[#allocation3 + $0x10] sm:$0xff] -inf
          %219 = vst [vmem:[#allocation3 + $0x18] sm:$0xff] -inf
        $region40: #{tpu_custom_call.1} parent=31 // pred_fallthru
          _
        %v220 = vld [vmem:[%s179] sm:$0xff]
        %v221 = vld [vmem:[%s179 + $0x10] sm:$0xff]
        %v222 = vld [vmem:[%s179 + $0x20] sm:$0xff]
        %v223 = vld [vmem:[%s179 + $0x30] sm:$0xff]
        %v224 = vld [vmem:[#allocation2] sm:$0xff]
        %v225 = vld [vmem:[#allocation2 + $0x8] sm:$0xff]
        %v226 = vld [vmem:[#allocation2 + $0x10] sm:$0xff]
        %v227 = vld [vmem:[#allocation2 + $0x18] sm:$0xff]
        %v228 = vadd.f32 %v224, %v220
        %v229 = vadd.f32 %v225, %v221
        %v230 = vadd.f32 %v226, %v222
        %v231 = vadd.f32 %v227, %v223
        %232 = vst [vmem:[#allocation2] sm:$0xff] %v228
        %233 = vst [vmem:[#allocation2 + $0x8] sm:$0xff] %v229
        %234 = vst [vmem:[#allocation2 + $0x10] sm:$0xff] %v230
        %235 = vst [vmem:[#allocation2 + $0x18] sm:$0xff] %v231
        %v236 = vld [vmem:[#allocation3] sm:$0xff]
        %v237 = vld [vmem:[#allocation3 + $0x8] sm:$0xff]
        %v238 = vld [vmem:[#allocation3 + $0x10] sm:$0xff]
        %v239 = vld [vmem:[#allocation3 + $0x18] sm:$0xff]
        %v240 = vmax.f32 %v236, %v220
        %v241 = vmax.f32 %v237, %v221
        %v242 = vmax.f32 %v238, %v222
        %v243 = vmax.f32 %v239, %v223
        %244 = vst [vmem:[#allocation3] sm:$0xff] %v240
        %245 = vst [vmem:[#allocation3 + $0x8] sm:$0xff] %v241
        %246 = vst [vmem:[#allocation3 + $0x10] sm:$0xff] %v242
        %247 = vst [vmem:[#allocation3 + $0x18] sm:$0xff] %v243
        %v248 = vld [vmem:[%s179 + $0x8] sm:$0xff]
        %v249 = vld [vmem:[%s179 + $0x18] sm:$0xff]
        %v250 = vld [vmem:[%s179 + $0x28] sm:$0xff]
        %v251 = vld [vmem:[%s179 + $0x38] sm:$0xff]
        %v252 = vld [vmem:[#allocation2] sm:$0xff]
        %v253 = vld [vmem:[#allocation2 + $0x8] sm:$0xff]
        %v254 = vld [vmem:[#allocation2 + $0x10] sm:$0xff]
        %v255 = vld [vmem:[#allocation2 + $0x18] sm:$0xff]
        %v256 = vadd.f32 %v252, %v248
        %v257 = vadd.f32 %v253, %v249
        %v258 = vadd.f32 %v254, %v250
        %v259 = vadd.f32 %v255, %v251
        %260 = vst [vmem:[#allocation2] sm:$0xff] %v256
        %261 = vst [vmem:[#allocation2 + $0x8] sm:$0xff] %v257
        %262 = vst [vmem:[#allocation2 + $0x10] sm:$0xff] %v258
        %263 = vst [vmem:[#allocation2 + $0x18] sm:$0xff] %v259
        %v264 = vld [vmem:[#allocation3] sm:$0xff]
        %v265 = vld [vmem:[#allocation3 + $0x8] sm:$0xff]
        %v266 = vld [vmem:[#allocation3 + $0x10] sm:$0xff]
        %v267 = vld [vmem:[#allocation3 + $0x18] sm:$0xff]
        %v268 = vmax.f32 %v264, %v248
        %v269 = vmax.f32 %v265, %v249
        %v270 = vmax.f32 %v266, %v250
        %v271 = vmax.f32 %v267, %v251
        %272 = vst [vmem:[#allocation3] sm:$0xff] %v268
        %273 = vst [vmem:[#allocation3 + $0x8] sm:$0xff] %v269
        %274 = vst [vmem:[#allocation3 + $0x10] sm:$0xff] %v270
        %275 = vst [vmem:[#allocation3 + $0x18] sm:$0xff] %v271
        // Predicated region
        $region41: #{tpu_custom_call.1} parent=31 // pred_check
          %p276 = pneg %p208
        $region42: #{tpu_custom_call.1} parent=31 // pred_check_branch
          %278 = sbr.rel (%p276) target = $region44
        $region43: #{tpu_custom_call.1} parent=31 // pred_region
          %v279 = vld [vmem:[#allocation2] sm:$0xff]
          %v280 = vld [vmem:[#allocation2 + $0x8] sm:$0xff]
          %v281 = vld [vmem:[#allocation2 + $0x10] sm:$0xff]
          %v282 = vld [vmem:[#allocation2 + $0x18] sm:$0xff]
          %283 = vadd.xlane.f32.xlu0 %v279
          %v284 = vpop.xlane.xlu0 %283
          %285 = vadd.xlane.f32.xlu0 %v280
          %v286 = vpop.xlane.xlu0 %285
          %287 = vadd.xlane.f32.xlu0 %v281
          %v288 = vpop.xlane.xlu0 %287
          %289 = vadd.xlane.f32.xlu0 %v282
          %v290 = vpop.xlane.xlu0 %289
          %v291 = vmul.f32 %v284, 0.00390625
          %v292 = vmul.f32 %v286, 0.00390625
          %v293 = vmul.f32 %v288, 0.00390625
          %v294 = vmul.f32 %v290, 0.00390625
          %v295 = vld [vmem:[#allocation3] sm:$0xff]
          %v296 = vld [vmem:[#allocation3 + $0x8] sm:$0xff]
          %v297 = vld [vmem:[#allocation3 + $0x10] sm:$0xff]
          %v298 = vld [vmem:[#allocation3 + $0x18] sm:$0xff]
          %299 = vmax.xlane.f32.xlu0 %v295
          %v300 = vpop.xlane.xlu0 %299
          %301 = vmax.xlane.f32.xlu0 %v296
          %v302 = vpop.xlane.xlu0 %301
          %303 = vmax.xlane.f32.xlu0 %v297
          %v304 = vpop.xlane.xlu0 %303
          %305 = vmax.xlane.f32.xlu0 %v298
          %v306 = vpop.xlane.xlu0 %305
          %v311 = vlaneseq
          %v312 = vand.u32 %v311, 127
          %v313 = vlaneseq
          %v314 = vshrl.u32 %v313, 7
          %v315 = vsub.s32 %v312, %v314
          %v316 = vrot.slane %v291, %v315
          %v317 = vadd.s32 %v312, 4294967288
          %v318 = vlaneseq
          %v319 = vshrl.u32 %v318, 7
          %v320 = vsub.s32 %v317, %v319
          %v321 = vrot.slane %v292, %v320
          %vm322 = vcmask 130112
          %v323 = vsel %vm322, %v321, %v316
          %v324 = vadd.s32 %v312, 4294967280
          %v325 = vlaneseq
          %v326 = vshrl.u32 %v325, 7
          %v327 = vsub.s32 %v324, %v326
          %v328 = vrot.slane %v293, %v327
          %vm329 = vcmask 195712
          %v330 = vsel %vm329, %v328, %v323
          %v331 = vadd.s32 %v312, 4294967272
          %v332 = vlaneseq
          %v333 = vshrl.u32 %v332, 7
          %v334 = vsub.s32 %v331, %v333
          %v335 = vrot.slane %v294, %v334
          %vm336 = vcmask 261312
          %v337 = vsel %vm336, %v335, %v330
          %v343 = vlaneseq
          %v344 = vshrl.u32 %v343, 7
          %v345 = vsub.s32 %v312, %v344
          %v346 = vrot.slane %v300, %v345
          %v347 = vlaneseq
          %v348 = vshrl.u32 %v347, 7
          %v349 = vsub.s32 %v317, %v348
          %v350 = vrot.slane %v302, %v349
          %v351 = vsel %vm322, %v350, %v346
          %v352 = vlaneseq
          %v353 = vshrl.u32 %v352, 7
          %v354 = vsub.s32 %v324, %v353
          %v355 = vrot.slane %v304, %v354
          %v356 = vsel %vm329, %v355, %v351
          %v357 = vlaneseq
          %v358 = vshrl.u32 %v357, 7
          %v359 = vsub.s32 %v331, %v358
          %v360 = vrot.slane %v306, %v359
          %v361 = vsel %vm336, %v360, %v356
          %vm363 = vcmask 1040384
          %v364 = vsel %vm363, %v337, %v361
          %v365 = vld [vmem:[%s1] sm:$0xff]
          %v366 = vld [vmem:[%s1 + $0x8] sm:$0xff]
          %v367 = vld [vmem:[%s1 + $0x10] sm:$0xff]
          %v368 = vld [vmem:[%s1 + $0x18] sm:$0xff]
          %vm369 = vcmask 261120
          %v371 = vsel %vm369, %v364, 0
          %373 = vmatprep.subr.mxu0 0.0
          %374 = vmatpush1.msra.mxu0 %v365
          %375 = vmatprep.subr.mxu0 0.0
          %376 = vmatpush1.msra.mxu0 %v366
          %377 = vmatprep.subr.mxu0 0.0
          %378 = vmatpush1.msra.mxu0 %v367
          %379 = vmatprep.subr.mxu0 0.0
          %380 = vmatpush1.msra.mxu0 %v368
          %381 = vmatprep.subr.mxu0 0.0
          %382 = vmatpush1.msra.mxu0 0.0
          %383 = vmatprep.subr.mxu0 0.0
          %384 = vmatpush1.msra.mxu0 0.0
          %385 = vmatprep.subr.mxu0 0.0
          %386 = vmatpush1.msra.mxu0 0.0
          %387 = vmatprep.subr.mxu0 0.0
          %388 = vmatpush1.msra.mxu0 0.0
          %389 = vmatprep.subr.mxu0 0.0
          %390 = vmatpush1.msra.mxu0 0.0
          %391 = vmatprep.subr.mxu0 0.0
          %392 = vmatpush1.msra.mxu0 0.0
          %393 = vmatprep.subr.mxu0 0.0
          %394 = vmatpush1.msra.mxu0 0.0
          %395 = vmatprep.subr.mxu0 0.0
          %396 = vmatpush1.msra.mxu0 0.0
          %397 = vmatprep.subr.mxu0 0.0
          %398 = vmatpush1.msra.mxu0 0.0
          %399 = vmatprep.subr.mxu0 0.0
          %400 = vmatpush1.msra.mxu0 0.0
          %401 = vmatprep.subr.mxu0 0.0
          %402 = vmatpush1.msra.mxu0 0.0
          %403 = vmatprep.subr.mxu0 0.0
          %404 = vmatpush1.msra.mxu0 0.0
          %405 = vmatprep.subr.mxu0 0.0
          %406 = vmatpush1.msra.mxu0 0.0
          %407 = vmatprep.subr.mxu0 0.0
          %408 = vmatpush1.msra.mxu0 0.0
          %409 = vmatprep.subr.mxu0 0.0
          %410 = vmatpush1.msra.mxu0 0.0
          %411 = vmatprep.subr.mxu0 0.0
          %412 = vmatpush1.msra.mxu0 0.0
          %413 = vmatprep.subr.mxu0 0.0
          %414 = vmatpush1.msra.mxu0 0.0
          %415 = vmatprep.subr.mxu0 0.0
          %416 = vmatpush1.msra.mxu0 0.0
          %417 = vmatprep.subr.mxu0 0.0
          %418 = vmatpush1.msra.mxu0 0.0
          %419 = vmatprep.subr.mxu0 0.0
          %420 = vmatpush1.msra.mxu0 0.0
          %421 = vmatprep.subr.mxu0 0.0
          %422 = vmatpush1.msra.mxu0 0.0
          %423 = vmatprep.subr.mxu0 0.0
          %424 = vmatpush1.msra.mxu0 0.0
          %425 = vmatprep.subr.mxu0 0.0
          %426 = vmatpush1.msra.mxu0 0.0
          %427 = vmatprep.subr.mxu0 0.0
          %428 = vmatpush1.msra.mxu0 0.0
          %429 = vmatprep.subr.mxu0 0.0
          %430 = vmatpush1.msra.mxu0 0.0
          %431 = vmatprep.subr.mxu0 0.0
          %432 = vmatpush1.msra.mxu0 0.0
          %433 = vmatprep.subr.mxu0 0.0
          %434 = vmatpush1.msra.mxu0 0.0
          %435 = vmatprep.subr.mxu0 0.0
          %436 = vmatpush1.msra.mxu0 0.0
          %437 = vmatprep.mubr.f32.mxu0 0.0
          %438 = vmatmul.mubr.f32.gmra.mrb[0].mxu0 %v371
          %v439 = vpop.f32.mrb[0].mxu0
          %v440 = vadd.f32 0.0, %v439
          %v441 = vpop.f32.mrb[0].mxu0
          %442 = vdwg.mxu0
          %v443 = vmax.f32 %v440, 0.0
          %v444 = vld [vmem:[%s2] sm:$0x3]
          %vm445 = vcmask 15360
          %v447 = vsel %vm445, %v443, 0
          %vm449 = vcmask 1041408
          %v451 = vsel %vm449, %v444, 0
          %453 = vmatprep.subr.mxu0 0.0
          %454 = vmatpush1.msra.mxu0 %v451
          %455 = vmatprep.subr.mxu0 0.0
          %456 = vmatpush1.msra.mxu0 0.0
          %457 = vmatprep.subr.mxu0 0.0
          %458 = vmatpush1.msra.mxu0 0.0
          %459 = vmatprep.subr.mxu0 0.0
          %460 = vmatpush1.msra.mxu0 0.0
          %461 = vmatprep.subr.mxu0 0.0
          %462 = vmatpush1.msra.mxu0 0.0
          %463 = vmatprep.subr.mxu0 0.0
          %464 = vmatpush1.msra.mxu0 0.0
          %465 = vmatprep.subr.mxu0 0.0
          %466 = vmatpush1.msra.mxu0 0.0
          %467 = vmatprep.subr.mxu0 0.0
          %468 = vmatpush1.msra.mxu0 0.0
          %469 = vmatprep.subr.mxu0 0.0
          %470 = vmatpush1.msra.mxu0 0.0
          %471 = vmatprep.subr.mxu0 0.0
          %472 = vmatpush1.msra.mxu0 0.0
          %473 = vmatprep.subr.mxu0 0.0
          %474 = vmatpush1.msra.mxu0 0.0
          %475 = vmatprep.subr.mxu0 0.0
          %476 = vmatpush1.msra.mxu0 0.0
          %477 = vmatprep.subr.mxu0 0.0
          %478 = vmatpush1.msra.mxu0 0.0
          %479 = vmatprep.subr.mxu0 0.0
          %480 = vmatpush1.msra.mxu0 0.0
          %481 = vmatprep.subr.mxu0 0.0
          %482 = vmatpush1.msra.mxu0 0.0
          %483 = vmatprep.subr.mxu0 0.0
          %484 = vmatpush1.msra.mxu0 0.0
          %485 = vmatprep.subr.mxu0 0.0
          %486 = vmatpush1.msra.mxu0 0.0
          %487 = vmatprep.subr.mxu0 0.0
          %488 = vmatpush1.msra.mxu0 0.0
          %489 = vmatprep.subr.mxu0 0.0
          %490 = vmatpush1.msra.mxu0 0.0
          %491 = vmatprep.subr.mxu0 0.0
          %492 = vmatpush1.msra.mxu0 0.0
          %493 = vmatprep.subr.mxu0 0.0
          %494 = vmatpush1.msra.mxu0 0.0
          %495 = vmatprep.subr.mxu0 0.0
          %496 = vmatpush1.msra.mxu0 0.0
          %497 = vmatprep.subr.mxu0 0.0
          %498 = vmatpush1.msra.mxu0 0.0
          %499 = vmatprep.subr.mxu0 0.0
          %500 = vmatpush1.msra.mxu0 0.0
          %501 = vmatprep.subr.mxu0 0.0
          %502 = vmatpush1.msra.mxu0 0.0
          %503 = vmatprep.subr.mxu0 0.0
          %504 = vmatpush1.msra.mxu0 0.0
          %505 = vmatprep.subr.mxu0 0.0
          %506 = vmatpush1.msra.mxu0 0.0
          %507 = vmatprep.subr.mxu0 0.0
          %508 = vmatpush1.msra.mxu0 0.0
          %509 = vmatprep.subr.mxu0 0.0
          %510 = vmatpush1.msra.mxu0 0.0
          %511 = vmatprep.subr.mxu0 0.0
          %512 = vmatpush1.msra.mxu0 0.0
          %513 = vmatprep.subr.mxu0 0.0
          %514 = vmatpush1.msra.mxu0 0.0
          %515 = vmatprep.subr.mxu0 0.0
          %516 = vmatpush1.msra.mxu0 0.0
          %517 = vmatprep.mubr.f32.mxu0 0.0
          %518 = vmatmul.mubr.f32.gmra.mrb[0].mxu0 %v447
          %v519 = vpop.f32.mrb[0].mxu0
          %v520 = vadd.f32 0.0, %v519
          %v521 = vpop.f32.mrb[0].mxu0
          %522 = vdwg.mxu0
          %v524 = vrot.slane %v520, 1
          %v526 = vadd.f32 %v520, %v524
          %v527 = vxor.u32 %v526, 2147483648
          %v528 = vmul.f32 %v527, 1.442695
          %v529 = vpow.pop %v528
          %v530 = vadd.f32 %v529, 1.0
          %v531 = vrcp.pop %v530
          %v532 = vmul.f32 1.0, %v531
          %v533 = vlaneseq
          %v534 = vshrl.u32 %v533, 7
          %v535 = vsub.s32 0, %v534
          %v536 = vrot.slane %v532, %v535
          %538 = vbcast.lane.b32.xlu0 %v536, 256
          %v539 = vpop.permute.xlu0 %538
          %s541 = sor.u32 256, 8
          %542 = vbcast.lane.b32.xlu0 %v536, %s541
          %v543 = vpop.permute.xlu0 %542
          %s545 = sor.u32 256, 16
          %546 = vbcast.lane.b32.xlu0 %v536, %s545
          %v547 = vpop.permute.xlu0 %546
          %s549 = sor.u32 256, 24
          %550 = vbcast.lane.b32.xlu0 %v536, %s549
          %v551 = vpop.permute.xlu0 %550
          %vm552 = vcmask 7168
          %553 = vst.msk [vmem:[%s207] sm:$0xff] %vm552, %v539
          %554 = vst.msk [vmem:[%s207 + $0x8] sm:$0xff] %vm552, %v543
          %555 = vst.msk [vmem:[%s207 + $0x10] sm:$0xff] %vm552, %v547
          %556 = vst.msk [vmem:[%s207 + $0x18] sm:$0xff] %vm552, %v551
        $region44: #{tpu_custom_call.1} parent=31 // pred_fallthru
          _
        %p557 = scmp.lt.s32.totalorder %s21, 1
        %s558 = scalar_select %p557, %s21, 1
        %s559 = smul.addr %s558, 4
        %s560 = smul.addr %s559, 8
        %s561 = scalar_lea.vmem %s3, %s560
        // Predicated region
        $region45: #{tpu_custom_call.1} parent=31 // pred_check
          %p562 = pneg %p117
        $region46: #{tpu_custom_call.1} parent=31 // pred_check_branch
          %564 = sbr.rel (%p562) target = $region48
        $region47: #{tpu_custom_call.1} parent=31 // pred_region
          _
        $region48: #{tpu_custom_call.1} parent=31 // pred_fallthru
          _
      $region32: #{tpu_custom_call.1} parent=5 // pred_fallthru
        _
      %p565 = scmp.le.s32.totalorder 2, %s12
      // Predicated region
      $region49: #{tpu_custom_call.1} parent=5 // pred_check
        %p566 = pneg %p565
      $region50: #{tpu_custom_call.1} parent=5 // pred_check_branch
        %568 = sbr.rel (%p566) target = $region52
      $region51: #{tpu_custom_call.1} parent=5 // pred_region
        %s569 = ssub.s32 %s12, 2
        // Predicated region
        $region53: #{tpu_custom_call.1} parent=51 // pred_check
          %p570 = pneg %p123
        $region54: #{tpu_custom_call.1} parent=51 // pred_check_branch
          %572 = sbr.rel (%p570) target = $region56
        $region55: #{tpu_custom_call.1} parent=51 // pred_region
          %p573 = scmp.lt.s32.totalorder %s23, 1
          %s574 = scalar_select %p573, %s23, 1
          %s575 = smul.addr %s574, 4
          %s576 = smul.addr %s575, 8
          %s577 = scalar_lea.vmem %s3, %s576
        $region56: #{tpu_custom_call.1} parent=51 // pred_fallthru
          _
      $region52: #{tpu_custom_call.1} parent=5 // pred_fallthru
        _
    $region6: #{tpu_custom_call.1} parent=1 // loop_footer
      %s16 = sadd.s32 1, %s12
    $region7: #{tpu_custom_call.1} parent=1 // loop_footer_branch
      %11 = sbr.rel target = $region3
    $region8: #{tpu_custom_call.1} parent=1 // loop_exit
      _
    %578 = vsyncpa [#allocation5], 1
    %s579 = scalar_lea.sflag [#allocation5], 1
    %580 = vsyncpa %s579, 1

</llo_original>
